<compile_context>
chip_gen: v7x
topology: tpu7x:2x2x1
jax: 0.10.0
libtpu: 0.0.40
codegen_flags: <defaults>
</compile_context>

<pallas_src>
import functools

import jax
import jax.numpy as jnp
from jax.experimental import pallas as pl
from jax.experimental.pallas import tpu as pltpu

LANE = 128  # lane-dense padding target for hidden / output dims


def _round_up(x, m):
    return ((x + m - 1) // m) * m


# -----------------------------------------------------------------------------
# Kernel: one fused 3-layer MLP on the zero-padded block-diagonal weights.
# -----------------------------------------------------------------------------
def fused_split_mlp_kernel(x_ref, w_ref, b_ref, o_ref, *, d_in):
    # x_ref : (TB, D)            w_ref : (3, 128, 128)  (zero-padded pack)
    # b_ref : (3, 1, 128) f32    o_ref : (TB, 128) f32  (cols >= O are zeros)
    cdt = w_ref.dtype
    x = x_ref[...].astype(cdt)                                # (TB, D)

    # Layer 1: Linear -> ReLU   (Dropout == identity in eval mode)
    w1 = w_ref[0, :d_in, :]                                   # (D, 128)
    h = jnp.dot(x, w1, preferred_element_type=jnp.float32) + b_ref[0]
    h = jnp.maximum(h, 0.0)

    # Layer 2: Linear -> ReLU   (Dropout == identity in eval mode)
    h = jnp.dot(h.astype(cdt), w_ref[1],
                preferred_element_type=jnp.float32) + b_ref[1]
    h = jnp.maximum(h, 0.0)

    # Layer 3: Linear — produces [pos_out | load_out | 0-pad] directly.
    out = jnp.dot(h.astype(cdt), w_ref[2],
                  preferred_element_type=jnp.float32) + b_ref[2]

    o_ref[...] = out.astype(o_ref.dtype)                      # full-lane store


# -----------------------------------------------------------------------------
# Host-side (one-time) parameter fusion + lane-dense packing.
# -----------------------------------------------------------------------------
def pack_split_params(params, weight_dtype=jnp.bfloat16):
    """Fuse pos/load branches into zero-padded block-diagonal weight/bias packs.

    params: (w1p, b1p, w2p, b2p, w3p, b3p, w1l, b1l, w2l, b2l, w3l, b3l)
            weights stored as (in, out) = torch weight.T, biases (1, out).
    Returns (wpack (3,128,128), bpack (3,1,128) f32, (d_in, o_dim)).
    """
    (w1p, b1p, w2p, b2p, w3p, b3p, w1l, b1l, w2l, b2l, w3l, b3l) = params
    d_in = w1p.shape[0]
    h = w1p.shape[1]
    half_out = w3p.shape[1]
    h2 = 2 * h
    o_dim = 2 * half_out
    assert d_in <= LANE and h2 <= LANE and o_dim <= LANE, \
        "packing assumes D, 2H, O all fit in 128 lanes"

    wd = weight_dtype
    wpack = jnp.zeros((3, LANE, LANE), wd)
    # layer 1: [w1p | w1l] in the top (d_in, 2H) corner
    wpack = wpack.at[0, :d_in, :h].set(w1p.astype(wd))
    wpack = wpack.at[0, :d_in, h:h2].set(w1l.astype(wd))
    # layer 2: block-diag(w2p, w2l) in the top-left (2H, 2H) corner
    wpack = wpack.at[1, :h, :h].set(w2p.astype(wd))
    wpack = wpack.at[1, h:h2, h:h2].set(w2l.astype(wd))
    # layer 3: block-diag(w3p, w3l) in the top-left (2H, O) corner
    wpack = wpack.at[2, :h, :half_out].set(w3p.astype(wd))
    wpack = wpack.at[2, h:h2, half_out:o_dim].set(w3l.astype(wd))

    bpack = jnp.zeros((3, 1, LANE), jnp.float32)              # biases stay f32
    bpack = bpack.at[0, :, :h].set(b1p)
    bpack = bpack.at[0, :, h:h2].set(b1l)
    bpack = bpack.at[1, :, :h].set(b2p)
    bpack = bpack.at[1, :, h:h2].set(b2l)
    bpack = bpack.at[2, :, :half_out].set(b3p)
    bpack = bpack.at[2, :, half_out:o_dim].set(b3l)

    return wpack, bpack, (d_in, o_dim)


# -----------------------------------------------------------------------------
# Pallas wrapper.
# -----------------------------------------------------------------------------
def split_model_forward(x, wpack, bpack, d_in, o_dim, *, block_b=2048):
    """x: (B, D).  wpack: (3, 128, 128).  bpack: (3, 1, 128) f32.  -> (B, O) f32."""
    B = x.shape[0]
    assert x.shape[1] == d_in
    lane = wpack.shape[-1]

    # Cast the dominant O(B) HBM stream to the weight dtype on the host
    # (bf16 halves the input DMA traffic; MXU accumulation stays f32).
    x = x.astype(wpack.dtype)

    # Batch tile: full batch for tiny B; otherwise a multiple of 8 chosen so
    # the grid has >= 2 steps (lets v7x shard the parallel axis across 2 TCs),
    # capped at block_b to bound VMEM.
    if B <= 8:
        tb = B
    else:
        tb = min(block_b, _round_up(pl.cdiv(B, 2), 8))
    grid = (pl.cdiv(B, tb),)

    flops = 2 * B * (d_in * lane + lane * lane + lane * lane)
    bytes_accessed = int(
        x.size * x.dtype.itemsize
        + wpack.size * wpack.dtype.itemsize
        + bpack.size * bpack.dtype.itemsize
        + B * lane * 4
    )

    kernel = functools.partial(fused_split_mlp_kernel, d_in=d_in)

    out_padded = pl.pallas_call(
        kernel,
        out_shape=jax.ShapeDtypeStruct((B, lane), jnp.float32),
        grid=grid,
        in_specs=[
            pl.BlockSpec((tb, d_in), lambda i: (i, 0)),        # x: tiled over batch
            pl.BlockSpec((3, lane, lane), lambda i: (0, 0, 0)),  # weights: VMEM-resident
            pl.BlockSpec((3, 1, lane), lambda i: (0, 0, 0)),     # biases:  VMEM-resident
        ],
        out_specs=pl.BlockSpec((tb, lane), lambda i: (i, 0)),  # lane-dense output
        compiler_params=pltpu.CompilerParams(dimension_semantics=("parallel",)),
        cost_estimate=pl.CostEstimate(
            flops=flops, transcendentals=0, bytes_accessed=bytes_accessed
        ),
    )(x, wpack, bpack)

    # Slice back to the module's (B, O) interface outside the kernel.
    return out_padded[:, :o_dim]


def split_model_apply(x, wpack, bpack, d_in, o_dim, *, min_kernel_batch=256):
    """Caller-side dispatch: plain fused jnp MLP for tiny batches (launch/DMA
    overhead dominates there), Pallas kernel otherwise."""
    if x.shape[0] < min_kernel_batch:
        xw = x.astype(wpack.dtype)
        h = jnp.maximum(jnp.dot(xw, wpack[0, :d_in, :],
                                preferred_element_type=jnp.float32) + bpack[0], 0.0)
        h = jnp.maximum(jnp.dot(h.astype(wpack.dtype), wpack[1],
                                preferred_element_type=jnp.float32) + bpack[1], 0.0)
        out = jnp.dot(h.astype(wpack.dtype), wpack[2],
                      preferred_element_type=jnp.float32) + bpack[2]
        return out[:, :o_dim]
    return split_model_forward(x, wpack, bpack, d_in, o_dim)


# -----------------------------------------------------------------------------
# Deterministic init (torch-default-like), weights stored as (in, out).
# -----------------------------------------------------------------------------
def init_params(key, input_dim, nodes, half_out):
    def linear(k, fan_in, fan_out):
        kw, kb = jax.random.split(k)
        bound = 1.0 / jnp.sqrt(fan_in)
        w = jax.random.uniform(kw, (fan_in, fan_out), jnp.float32, -bound, bound)
        b = jax.random.uniform(kb, (1, fan_out), jnp.float32, -bound, bound)
        return w, b

    keys = jax.random.split(key, 6)
    w1p, b1p = linear(keys[0], input_dim, nodes)
    w2p, b2p = linear(keys[1], nodes, nodes)
    w3p, b3p = linear(keys[2], nodes, half_out)
    w1l, b1l = linear(keys[3], input_dim, nodes)
    w2l, b2l = linear(keys[4], nodes, nodes)
    w3l, b3l = linear(keys[5], nodes, half_out)
    return (w1p, b1p, w2p, b2p, w3p, b3p,
            w1l, b1l, w2l, b2l, w3l, b3l)


if __name__ == "__main__":
    # Small shapes consistent with SplitModel(nodes, input_dim, output_dim).
    batch, input_dim, nodes, output_dim = 8, 16, 32, 8
    half_out = output_dim // 2

    key = jax.random.PRNGKey(0)
    kx, kp, kx2 = jax.random.split(key, 3)
    x = jax.random.normal(kx, (batch, input_dim), jnp.float32)
    params = init_params(kp, input_dim, nodes, half_out)

    # Pure-JAX reference of the original (unfused) two-branch network.
    def ref_mlp(x, w1, b1, w2, b2, w3, b3):
        h = jnp.maximum(x @ w1 + b1, 0.0)
        h = jnp.maximum(h @ w2 + b2, 0.0)
        return h @ w3 + b3

    def ref_split(x):
        return jnp.concatenate(
            [ref_mlp(x, *params[:6]), ref_mlp(x, *params[6:])], axis=-1)

    ref = ref_split(x)

    # 1) f32 packed path (block-diagonal fusion + zero padding are exact).
    wpack32, bpack32, (d_in, o_dim) = pack_split_params(
        params, weight_dtype=jnp.float32)
    out32 = jax.block_until_ready(
        split_model_forward(x, wpack32, bpack32, d_in, o_dim))
    assert out32.shape == (batch, output_dim)
    assert jnp.allclose(out32, ref, atol=1e-4, rtol=1e-4)

    # 2) Default bf16 path (host-side bf16 x, bf16 weights, f32 accumulation).
    wpack, bpack, _ = pack_split_params(params, weight_dtype=jnp.bfloat16)
    out16 = jax.block_until_ready(
        split_model_forward(x, wpack, bpack, d_in, o_dim))
    assert out16.shape == (batch, output_dim)
    assert jnp.allclose(out16, ref, atol=5e-2, rtol=5e-2)

    # 3) Multi-step grid + partial (masked) batch tile: B=20 -> tb=16, grid=(2,).
    x2 = jax.random.normal(kx2, (20, input_dim), jnp.float32)
    out_multi = jax.block_until_ready(
        split_model_forward(x2, wpack32, bpack32, d_in, o_dim))
    assert out_multi.shape == (20, output_dim)
    assert jnp.allclose(out_multi, ref_split(x2), atol=1e-4, rtol=1e-4)

    print("KERNEL_OK")
</pallas_src>

<mosaic_0001>
module attributes {stable_mosaic.version = 11 : i64} {
  func.func @fused_split_mlp_kernel(%arg0: i32, %arg1: memref<8x16xf32, #tpu.memory_space<vmem>>, %arg2: memref<3x128x128xf32, #tpu.memory_space<vmem>>, %arg3: memref<3x1x128xf32, #tpu.memory_space<vmem>>, %arg4: memref<8x128xf32, #tpu.memory_space<vmem>>) attributes {dimension_semantics = [#tpu.dimension_semantics<parallel>], iteration_bounds = array<i64: 1>, scalar_prefetch = 0 : i64, scratch_operands = 0 : i64, tpu.core_type = #tpu.core_type<tc>, window_params = [{transform_indices = @transform_0, window_bounds = array<i64: 8, 16>}, {pipeline_mode = #tpu.pipeline_mode<synchronous>, transform_indices = @transform_1, window_bounds = array<i64: 3, 128, 128>}, {pipeline_mode = #tpu.pipeline_mode<synchronous>, transform_indices = @transform_2, window_bounds = array<i64: 3, 1, 128>}, {transform_indices = @transform_3, window_bounds = array<i64: 8, 128>}]} {
    %c0 = arith.constant 0 : index
    %c0_0 = arith.constant 0 : index
    %0 = vector.load %arg1[%c0, %c0_0] : memref<8x16xf32, #tpu.memory_space<vmem>>, vector<8x16xf32>
    %c0_1 = arith.constant 0 : index
    %c0_2 = arith.constant 0 : index
    %c0_3 = arith.constant 0 : index
    %1 = vector.load %arg2[%c0_1, %c0_2, %c0_3] : memref<3x128x128xf32, #tpu.memory_space<vmem>>, vector<1x16x128xf32>
    %2 = vector.shape_cast %1 : vector<1x16x128xf32> to vector<16x128xf32>
    %cst = arith.constant dense<0.000000e+00> : vector<8x128xf32>
    %3 = tpu.matmul %0, %2, %cst {dimension_numbers = #tpu.dot_dimension_numbers<[1], [0], [0], [1], [0, 0, 1, 1], [], []>} : vector<8x16xf32>, vector<16x128xf32>, vector<8x128xf32> -> vector<8x128xf32>
    %c0_4 = arith.constant 0 : index
    %c0_5 = arith.constant 0 : index
    %c0_6 = arith.constant 0 : index
    %4 = vector.load %arg3[%c0_4, %c0_5, %c0_6] : memref<3x1x128xf32, #tpu.memory_space<vmem>>, vector<1x1x128xf32>
    %5 = vector.shape_cast %4 : vector<1x1x128xf32> to vector<1x128xf32>
    %6 = vector.broadcast %5 : vector<1x128xf32> to vector<8x128xf32>
    %7 = arith.addf %3, %6 : vector<8x128xf32>
    %cst_7 = arith.constant 0.000000e+00 : f32
    %8 = vector.broadcast %cst_7 : f32 to vector<8x128xf32>
    %9 = arith.maximumf %7, %8 : vector<8x128xf32>
    %c1 = arith.constant 1 : index
    %c0_8 = arith.constant 0 : index
    %c0_9 = arith.constant 0 : index
    %10 = vector.load %arg2[%c1, %c0_8, %c0_9] : memref<3x128x128xf32, #tpu.memory_space<vmem>>, vector<1x128x128xf32>
    %11 = vector.shape_cast %10 : vector<1x128x128xf32> to vector<128x128xf32>
    %cst_10 = arith.constant dense<0.000000e+00> : vector<8x128xf32>
    %12 = tpu.matmul %9, %11, %cst_10 {dimension_numbers = #tpu.dot_dimension_numbers<[1], [0], [0], [1], [0, 0, 1, 1], [], []>} : vector<8x128xf32>, vector<128x128xf32>, vector<8x128xf32> -> vector<8x128xf32>
    %c1_11 = arith.constant 1 : index
    %c0_12 = arith.constant 0 : index
    %c0_13 = arith.constant 0 : index
    %13 = vector.load %arg3[%c1_11, %c0_12, %c0_13] : memref<3x1x128xf32, #tpu.memory_space<vmem>>, vector<1x1x128xf32>
    %14 = vector.shape_cast %13 : vector<1x1x128xf32> to vector<1x128xf32>
    %15 = vector.broadcast %14 : vector<1x128xf32> to vector<8x128xf32>
    %16 = arith.addf %12, %15 : vector<8x128xf32>
    %cst_14 = arith.constant 0.000000e+00 : f32
    %17 = vector.broadcast %cst_14 : f32 to vector<8x128xf32>
    %18 = arith.maximumf %16, %17 : vector<8x128xf32>
    %c2 = arith.constant 2 : index
    %c0_15 = arith.constant 0 : index
    %c0_16 = arith.constant 0 : index
    %19 = vector.load %arg2[%c2, %c0_15, %c0_16] : memref<3x128x128xf32, #tpu.memory_space<vmem>>, vector<1x128x128xf32>
    %20 = vector.shape_cast %19 : vector<1x128x128xf32> to vector<128x128xf32>
    %cst_17 = arith.constant dense<0.000000e+00> : vector<8x128xf32>
    %21 = tpu.matmul %18, %20, %cst_17 {dimension_numbers = #tpu.dot_dimension_numbers<[1], [0], [0], [1], [0, 0, 1, 1], [], []>} : vector<8x128xf32>, vector<128x128xf32>, vector<8x128xf32> -> vector<8x128xf32>
    %c2_18 = arith.constant 2 : index
    %c0_19 = arith.constant 0 : index
    %c0_20 = arith.constant 0 : index
    %22 = vector.load %arg3[%c2_18, %c0_19, %c0_20] : memref<3x1x128xf32, #tpu.memory_space<vmem>>, vector<1x1x128xf32>
    %23 = vector.shape_cast %22 : vector<1x1x128xf32> to vector<1x128xf32>
    %24 = vector.broadcast %23 : vector<1x128xf32> to vector<8x128xf32>
    %25 = arith.addf %21, %24 : vector<8x128xf32>
    %c0_21 = arith.constant 0 : index
    %c0_22 = arith.constant 0 : index
    %26 = vector.load %arg4[%c0_21, %c0_22] : memref<8x128xf32, #tpu.memory_space<vmem>>, vector<8x128xf32>
    tpu.vector_store %arg4[%c0_21, %c0_22], %25 {strides = array<i32>} : memref<8x128xf32, #tpu.memory_space<vmem>>, vector<8x128xf32>,
    return
  }
  func.func @transform_0(%arg0: i32) -> (i32, i32) {
    %c0_i32 = arith.constant 0 : i32
    %c0_i32_0 = arith.constant 0 : i32
    return %arg0, %c0_i32 : i32, i32
  }
  func.func @transform_1(%arg0: i32) -> (i32, i32, i32) {
    %c0_i32 = arith.constant 0 : i32
    %c0_i32_0 = arith.constant 0 : i32
    %c0_i32_1 = arith.constant 0 : i32
    %c0_i32_2 = arith.constant 0 : i32
    return %c0_i32, %c0_i32_0, %c0_i32_1 : i32, i32, i32
  }
  func.func @transform_2(%arg0: i32) -> (i32, i32, i32) {
    %c0_i32 = arith.constant 0 : i32
    %c0_i32_0 = arith.constant 0 : i32
    %c0_i32_1 = arith.constant 0 : i32
    %c0_i32_2 = arith.constant 0 : i32
    return %c0_i32, %c0_i32_0, %c0_i32_1 : i32, i32, i32
  }
  func.func @transform_3(%arg0: i32) -> (i32, i32) {
    %c0_i32 = arith.constant 0 : i32
    %c0_i32_0 = arith.constant 0 : i32
    return %arg0, %c0_i32 : i32, i32
  }
}

</mosaic_0001>

<llo_original>
// kernel: tpu_custom_call.1
$region0: #{tpu_custom_call.1}
  #allocation0 [shape = 'u32[]', space=smem, size = 0x4, offset = 0x4, fixed_abs, tag = 'smem constant byte address 0x4 - core index']
  #allocation1 [shape = 'u32[144,128]{1,0:T(1,128)}', space=vmem, size = 0x12000, scoped, tag = 'internal scratch']
  %s0 = inlined_call_operand.hbm [shape: f32[8,16], index: 0, kind: input, shape index: {}]
  %s1 = inlined_call_operand.hbm [shape: f32[3,128,128], index: 1, kind: input, shape index: {}]
  %s2 = inlined_call_operand.vmem [shape: f32[3,1,128], index: 2, kind: input, shape index: {}]
  %s3 = inlined_call_operand.hbm [shape: f32[8,128], index: 3, kind: output, shape index: {}]
  %s4 = sld [smem:[#allocation0]]
  $region30: #{tpu_custom_call.1} parent=0
    _
  %s6 = ssub.s32 1, %s4
  %s7 = scalar_select 0, %s6, %s4
  $region1: #{tpu_custom_call.1} parent=0
    #allocation2 [shape = 'u8[4096]{0}', space=vmem, size = 0x1000, scoped, tag = 'input window, operand 0, single buffered']
    #allocation3 [shape = 's32[1]{0}', space=sflag, size = 0x4, scoped, tag = 'scoped memory for tpu_custom_call.1']
    #allocation4 [shape = 's32[1]{0}', space=sflag, size = 0x4, scoped, tag = 'scoped memory for tpu_custom_call.1']
    #allocation5 [shape = 'u8[196608]{0}', space=vmem, size = 0x30000, scoped, tag = 'input window, operand 1, single buffered']
    #allocation6 [shape = 's32[1]{0}', space=sflag, size = 0x4, scoped, tag = 'scoped memory for tpu_custom_call.1']
    #allocation7 [shape = 'u8[4096]{0}', space=vmem, size = 0x1000, scoped, tag = 'output window, operand 0, single buffered']
    %8 = vsyncpa [#allocation3], 0
    %9 = vsyncpa [#allocation6], 0
    %10 = vsyncpa [#allocation4], 0
    // Predicated region
    $region2: #{tpu_custom_call.1} parent=1 // pred_check
      _
    $region3: #{tpu_custom_call.1} parent=1 // pred_check_branch
      %12 = sbr.rel (0) target = $region5
    $region4: #{tpu_custom_call.1} parent=1 // pred_region
      %s14 = ssub.s32 128, 128
      %15 = vsyncadd [#allocation3], %s14
      %s17 = sshll.u32 [#allocation2], 4
      %s18 = int_to_ptr.vmem [resolvable:$true] %s17
      %20 = dma.hbm_to_vmem [thread:$0]  %s0, 128, %s18, [#allocation3]
    $region5: #{tpu_custom_call.1} parent=1 // pred_fallthru
      _
    // Predicated region
    $region6: #{tpu_custom_call.1} parent=1 // pred_check
      _
    $region7: #{tpu_custom_call.1} parent=1 // pred_check_branch
      %22 = sbr.rel (0) target = $region9
    $region8: #{tpu_custom_call.1} parent=1 // pred_region
      %s24 = ssub.s32 6144, 6144
      %25 = vsyncadd [#allocation6], %s24
      %s26 = sshll.u32 [#allocation5], 4
      %s27 = int_to_ptr.vmem [resolvable:$true] %s26
      %32 = dma.hbm_to_vmem [thread:$0]  %s1, 6144, %s27, [#allocation6], 128, 128, 8
    $region9: #{tpu_custom_call.1} parent=1 // pred_fallthru
      _
    // Predicated region
    $region10: #{tpu_custom_call.1} parent=1 // pred_check
      _
    $region11: #{tpu_custom_call.1} parent=1 // pred_check_branch
      %34 = sbr.rel (0) target = $region13
    $region12: #{tpu_custom_call.1} parent=1 // pred_region
      _
    $region13: #{tpu_custom_call.1} parent=1 // pred_fallthru
      _
    // Predicated region
    $region14: #{tpu_custom_call.1} parent=1 // pred_check
      _
    $region15: #{tpu_custom_call.1} parent=1 // pred_check_branch
      %36 = sbr.rel (0) target = $region17
    $region16: #{tpu_custom_call.1} parent=1 // pred_region
      %37 = dma.done [#allocation3], 128
    $region17: #{tpu_custom_call.1} parent=1 // pred_fallthru
      _
    // Predicated region
    $region18: #{tpu_custom_call.1} parent=1 // pred_check
      _
    $region19: #{tpu_custom_call.1} parent=1 // pred_check_branch
      %39 = sbr.rel (0) target = $region21
    $region20: #{tpu_custom_call.1} parent=1 // pred_region
      %40 = dma.done [#allocation6], 6144
    $region21: #{tpu_custom_call.1} parent=1 // pred_fallthru
      _
    %v41 = vld [vmem:[#allocation2] sm:$0xff]
    %v42 = vld [vmem:[#allocation5] sm:$0xff]
    %v43 = vld [vmem:[#allocation5 + $0x8] sm:$0xff]
    %v44 = vld [vmem:[%s2] sm:$0x1]
    %v46 = vlaneseq
    %v47 = vshrl.u32 %v46, 7
    %v48 = vsub.s32 0, %v47
    %v49 = vrot.slane %v44, %v48
    %vm51 = vcmask 130048
    %v53 = vsel %vm51, %v41, 0
    %55 = vmatprep.subr.mxu0 0.0
    %56 = vmatpush1.msra.mxu0 %v42
    %57 = vmatprep.subr.mxu0 0.0
    %58 = vmatpush1.msra.mxu0 %v43
    %59 = vmatprep.subr.mxu0 0.0
    %60 = vmatpush1.msra.mxu0 0.0
    %61 = vmatprep.subr.mxu0 0.0
    %62 = vmatpush1.msra.mxu0 0.0
    %63 = vmatprep.subr.mxu0 0.0
    %64 = vmatpush1.msra.mxu0 0.0
    %65 = vmatprep.subr.mxu0 0.0
    %66 = vmatpush1.msra.mxu0 0.0
    %67 = vmatprep.subr.mxu0 0.0
    %68 = vmatpush1.msra.mxu0 0.0
    %69 = vmatprep.subr.mxu0 0.0
    %70 = vmatpush1.msra.mxu0 0.0
    %71 = vmatprep.subr.mxu0 0.0
    %72 = vmatpush1.msra.mxu0 0.0
    %73 = vmatprep.subr.mxu0 0.0
    %74 = vmatpush1.msra.mxu0 0.0
    %75 = vmatprep.subr.mxu0 0.0
    %76 = vmatpush1.msra.mxu0 0.0
    %77 = vmatprep.subr.mxu0 0.0
    %78 = vmatpush1.msra.mxu0 0.0
    %79 = vmatprep.subr.mxu0 0.0
    %80 = vmatpush1.msra.mxu0 0.0
    %81 = vmatprep.subr.mxu0 0.0
    %82 = vmatpush1.msra.mxu0 0.0
    %83 = vmatprep.subr.mxu0 0.0
    %84 = vmatpush1.msra.mxu0 0.0
    %85 = vmatprep.subr.mxu0 0.0
    %86 = vmatpush1.msra.mxu0 0.0
    %87 = vmatprep.subr.mxu0 0.0
    %88 = vmatpush1.msra.mxu0 0.0
    %89 = vmatprep.subr.mxu0 0.0
    %90 = vmatpush1.msra.mxu0 0.0
    %91 = vmatprep.subr.mxu0 0.0
    %92 = vmatpush1.msra.mxu0 0.0
    %93 = vmatprep.subr.mxu0 0.0
    %94 = vmatpush1.msra.mxu0 0.0
    %95 = vmatprep.subr.mxu0 0.0
    %96 = vmatpush1.msra.mxu0 0.0
    %97 = vmatprep.subr.mxu0 0.0
    %98 = vmatpush1.msra.mxu0 0.0
    %99 = vmatprep.subr.mxu0 0.0
    %100 = vmatpush1.msra.mxu0 0.0
    %101 = vmatprep.subr.mxu0 0.0
    %102 = vmatpush1.msra.mxu0 0.0
    %103 = vmatprep.subr.mxu0 0.0
    %104 = vmatpush1.msra.mxu0 0.0
    %105 = vmatprep.subr.mxu0 0.0
    %106 = vmatpush1.msra.mxu0 0.0
    %107 = vmatprep.subr.mxu0 0.0
    %108 = vmatpush1.msra.mxu0 0.0
    %109 = vmatprep.subr.mxu0 0.0
    %110 = vmatpush1.msra.mxu0 0.0
    %111 = vmatprep.subr.mxu0 0.0
    %112 = vmatpush1.msra.mxu0 0.0
    %113 = vmatprep.subr.mxu0 0.0
    %114 = vmatpush1.msra.mxu0 0.0
    %115 = vmatprep.subr.mxu0 0.0
    %116 = vmatpush1.msra.mxu0 0.0
    %117 = vmatprep.subr.mxu0 0.0
    %118 = vmatpush1.msra.mxu0 0.0
    %119 = vmatprep.mubr.f32.mxu0 0.0
    %120 = vmatmul.mubr.f32.gmra.mrb[0].mxu0 %v53
    %v121 = vpop.f32.mrb[0].mxu0
    %v122 = vadd.f32 %v49, %v121
    %v123 = vpop.f32.mrb[0].mxu0
    %124 = vdwg.mxu0
    %v125 = vmax.f32 %v122, 0.0
    %s126 = scalar_lea.vmem [#allocation5], 128
    %v127 = vld [vmem:[%s126] sm:$0xff]
    %v128 = vld [vmem:[%s126 + $0x8] sm:$0xff]
    %v129 = vld [vmem:[%s126 + $0x10] sm:$0xff]
    %v130 = vld [vmem:[%s126 + $0x18] sm:$0xff]
    %v131 = vld [vmem:[%s126 + $0x20] sm:$0xff]
    %v132 = vld [vmem:[%s126 + $0x28] sm:$0xff]
    %v133 = vld [vmem:[%s126 + $0x30] sm:$0xff]
    %v134 = vld [vmem:[%s126 + $0x38] sm:$0xff]
    %v135 = vld [vmem:[%s126 + $0x40] sm:$0xff]
    %v136 = vld [vmem:[%s126 + $0x48] sm:$0xff]
    %v137 = vld [vmem:[%s126 + $0x50] sm:$0xff]
    %v138 = vld [vmem:[%s126 + $0x58] sm:$0xff]
    %v139 = vld [vmem:[%s126 + $0x60] sm:$0xff]
    %v140 = vld [vmem:[%s126 + $0x68] sm:$0xff]
    %v141 = vld [vmem:[%s126 + $0x70] sm:$0xff]
    %v142 = vld [vmem:[%s126 + $0x78] sm:$0xff]
    %s143 = scalar_lea.vmem %s2, 1
    %v144 = vld [vmem:[%s143] sm:$0x1]
    %v146 = vlaneseq
    %v147 = vshrl.u32 %v146, 7
    %v148 = vsub.s32 0, %v147
    %v149 = vrot.slane %v144, %v148
    %151 = vmatprep.subr.mxu0 0.0
    %152 = vmatpush1.msra.mxu0 %v127
    %153 = vmatprep.subr.mxu0 0.0
    %154 = vmatpush1.msra.mxu0 %v128
    %155 = vmatprep.subr.mxu0 0.0
    %156 = vmatpush1.msra.mxu0 %v129
    %157 = vmatprep.subr.mxu0 0.0
    %158 = vmatpush1.msra.mxu0 %v130
    %159 = vmatprep.subr.mxu0 0.0
    %160 = vmatpush1.msra.mxu0 %v131
    %161 = vmatprep.subr.mxu0 0.0
    %162 = vmatpush1.msra.mxu0 %v132
    %163 = vmatprep.subr.mxu0 0.0
    %164 = vmatpush1.msra.mxu0 %v133
    %165 = vmatprep.subr.mxu0 0.0
    %166 = vmatpush1.msra.mxu0 %v134
    %167 = vmatprep.subr.mxu0 0.0
    %168 = vmatpush1.msra.mxu0 %v135
    %169 = vmatprep.subr.mxu0 0.0
    %170 = vmatpush1.msra.mxu0 %v136
    %171 = vmatprep.subr.mxu0 0.0
    %172 = vmatpush1.msra.mxu0 %v137
    %173 = vmatprep.subr.mxu0 0.0
    %174 = vmatpush1.msra.mxu0 %v138
    %175 = vmatprep.subr.mxu0 0.0
    %176 = vmatpush1.msra.mxu0 %v139
    %177 = vmatprep.subr.mxu0 0.0
    %178 = vmatpush1.msra.mxu0 %v140
    %179 = vmatprep.subr.mxu0 0.0
    %180 = vmatpush1.msra.mxu0 %v141
    %181 = vmatprep.subr.mxu0 0.0
    %182 = vmatpush1.msra.mxu0 %v142
    %183 = vmatprep.subr.mxu0 0.0
    %184 = vmatpush1.msra.mxu0 0.0
    %185 = vmatprep.subr.mxu0 0.0
    %186 = vmatpush1.msra.mxu0 0.0
    %187 = vmatprep.subr.mxu0 0.0
    %188 = vmatpush1.msra.mxu0 0.0
    %189 = vmatprep.subr.mxu0 0.0
    %190 = vmatpush1.msra.mxu0 0.0
    %191 = vmatprep.subr.mxu0 0.0
    %192 = vmatpush1.msra.mxu0 0.0
    %193 = vmatprep.subr.mxu0 0.0
    %194 = vmatpush1.msra.mxu0 0.0
    %195 = vmatprep.subr.mxu0 0.0
    %196 = vmatpush1.msra.mxu0 0.0
    %197 = vmatprep.subr.mxu0 0.0
    %198 = vmatpush1.msra.mxu0 0.0
    %199 = vmatprep.subr.mxu0 0.0
    %200 = vmatpush1.msra.mxu0 0.0
    %201 = vmatprep.subr.mxu0 0.0
    %202 = vmatpush1.msra.mxu0 0.0
    %203 = vmatprep.subr.mxu0 0.0
    %204 = vmatpush1.msra.mxu0 0.0
    %205 = vmatprep.subr.mxu0 0.0
    %206 = vmatpush1.msra.mxu0 0.0
    %207 = vmatprep.subr.mxu0 0.0
    %208 = vmatpush1.msra.mxu0 0.0
    %209 = vmatprep.subr.mxu0 0.0
    %210 = vmatpush1.msra.mxu0 0.0
    %211 = vmatprep.subr.mxu0 0.0
    %212 = vmatpush1.msra.mxu0 0.0
    %213 = vmatprep.subr.mxu0 0.0
    %214 = vmatpush1.msra.mxu0 0.0
    %215 = vmatprep.mubr.f32.mxu0 0.0
    %216 = vmatmul.mubr.f32.gmra.mrb[0].mxu0 %v125
    %v217 = vpop.f32.mrb[0].mxu0
    %v218 = vadd.f32 %v149, %v217
    %v219 = vpop.f32.mrb[0].mxu0
    %220 = vdwg.mxu0
    %v221 = vmax.f32 %v218, 0.0
    %s222 = scalar_lea.vmem [#allocation5], 256
    %v223 = vld [vmem:[%s222] sm:$0xff]
    %v224 = vld [vmem:[%s222 + $0x8] sm:$0xff]
    %v225 = vld [vmem:[%s222 + $0x10] sm:$0xff]
    %v226 = vld [vmem:[%s222 + $0x18] sm:$0xff]
    %v227 = vld [vmem:[%s222 + $0x20] sm:$0xff]
    %v228 = vld [vmem:[%s222 + $0x28] sm:$0xff]
    %v229 = vld [vmem:[%s222 + $0x30] sm:$0xff]
    %v230 = vld [vmem:[%s222 + $0x38] sm:$0xff]
    %v231 = vld [vmem:[%s222 + $0x40] sm:$0xff]
    %v232 = vld [vmem:[%s222 + $0x48] sm:$0xff]
    %v233 = vld [vmem:[%s222 + $0x50] sm:$0xff]
    %v234 = vld [vmem:[%s222 + $0x58] sm:$0xff]
    %v235 = vld [vmem:[%s222 + $0x60] sm:$0xff]
    %v236 = vld [vmem:[%s222 + $0x68] sm:$0xff]
    %v237 = vld [vmem:[%s222 + $0x70] sm:$0xff]
    %v238 = vld [vmem:[%s222 + $0x78] sm:$0xff]
    %s239 = scalar_lea.vmem %s2, 2
    %v240 = vld [vmem:[%s239] sm:$0x1]
    %v242 = vlaneseq
    %v243 = vshrl.u32 %v242, 7
    %v244 = vsub.s32 0, %v243
    %v245 = vrot.slane %v240, %v244
    %247 = vmatprep.subr.mxu0 0.0
    %248 = vmatpush1.msra.mxu0 %v223
    %249 = vmatprep.subr.mxu0 0.0
    %250 = vmatpush1.msra.mxu0 %v224
    %251 = vmatprep.subr.mxu0 0.0
    %252 = vmatpush1.msra.mxu0 %v225
    %253 = vmatprep.subr.mxu0 0.0
    %254 = vmatpush1.msra.mxu0 %v226
    %255 = vmatprep.subr.mxu0 0.0
    %256 = vmatpush1.msra.mxu0 %v227
    %257 = vmatprep.subr.mxu0 0.0
    %258 = vmatpush1.msra.mxu0 %v228
    %259 = vmatprep.subr.mxu0 0.0
    %260 = vmatpush1.msra.mxu0 %v229
    %261 = vmatprep.subr.mxu0 0.0
    %262 = vmatpush1.msra.mxu0 %v230
    %263 = vmatprep.subr.mxu0 0.0
    %264 = vmatpush1.msra.mxu0 %v231
    %265 = vmatprep.subr.mxu0 0.0
    %266 = vmatpush1.msra.mxu0 %v232
    %267 = vmatprep.subr.mxu0 0.0
    %268 = vmatpush1.msra.mxu0 %v233
    %269 = vmatprep.subr.mxu0 0.0
    %270 = vmatpush1.msra.mxu0 %v234
    %271 = vmatprep.subr.mxu0 0.0
    %272 = vmatpush1.msra.mxu0 %v235
    %273 = vmatprep.subr.mxu0 0.0
    %274 = vmatpush1.msra.mxu0 %v236
    %275 = vmatprep.subr.mxu0 0.0
    %276 = vmatpush1.msra.mxu0 %v237
    %277 = vmatprep.subr.mxu0 0.0
    %278 = vmatpush1.msra.mxu0 %v238
    %279 = vmatprep.subr.mxu0 0.0
    %280 = vmatpush1.msra.mxu0 0.0
    %281 = vmatprep.subr.mxu0 0.0
    %282 = vmatpush1.msra.mxu0 0.0
    %283 = vmatprep.subr.mxu0 0.0
    %284 = vmatpush1.msra.mxu0 0.0
    %285 = vmatprep.subr.mxu0 0.0
    %286 = vmatpush1.msra.mxu0 0.0
    %287 = vmatprep.subr.mxu0 0.0
    %288 = vmatpush1.msra.mxu0 0.0
    %289 = vmatprep.subr.mxu0 0.0
    %290 = vmatpush1.msra.mxu0 0.0
    %291 = vmatprep.subr.mxu0 0.0
    %292 = vmatpush1.msra.mxu0 0.0
    %293 = vmatprep.subr.mxu0 0.0
    %294 = vmatpush1.msra.mxu0 0.0
    %295 = vmatprep.subr.mxu0 0.0
    %296 = vmatpush1.msra.mxu0 0.0
    %297 = vmatprep.subr.mxu0 0.0
    %298 = vmatpush1.msra.mxu0 0.0
    %299 = vmatprep.subr.mxu0 0.0
    %300 = vmatpush1.msra.mxu0 0.0
    %301 = vmatprep.subr.mxu0 0.0
    %302 = vmatpush1.msra.mxu0 0.0
    %303 = vmatprep.subr.mxu0 0.0
    %304 = vmatpush1.msra.mxu0 0.0
    %305 = vmatprep.subr.mxu0 0.0
    %306 = vmatpush1.msra.mxu0 0.0
    %307 = vmatprep.subr.mxu0 0.0
    %308 = vmatpush1.msra.mxu0 0.0
    %309 = vmatprep.subr.mxu0 0.0
    %310 = vmatpush1.msra.mxu0 0.0
    %311 = vmatprep.mubr.f32.mxu0 0.0
    %312 = vmatmul.mubr.f32.gmra.mrb[0].mxu0 %v221
    %v313 = vpop.f32.mrb[0].mxu0
    %v314 = vadd.f32 %v245, %v313
    %v315 = vpop.f32.mrb[0].mxu0
    %316 = vdwg.mxu0
    %317 = vst [vmem:[#allocation7] sm:$0xff] %v314
    // Predicated region
    $region22: #{tpu_custom_call.1} parent=1 // pred_check
      _
    $region23: #{tpu_custom_call.1} parent=1 // pred_check_branch
      %319 = sbr.rel (0) target = $region25
    $region24: #{tpu_custom_call.1} parent=1 // pred_region
      %s321 = ssub.s32 128, 128
      %322 = vsyncadd [#allocation4], %s321
      %s324 = sshll.u32 [#allocation7], 4
      %s325 = int_to_ptr.vmem [resolvable:$true] %s324
      %327 = dma.vmem_to_hbm [thread:$0]  %s325, 128, %s3, [#allocation4]
    $region25: #{tpu_custom_call.1} parent=1 // pred_fallthru
      _
    // Predicated region
    $region26: #{tpu_custom_call.1} parent=1 // pred_check
      _
    $region27: #{tpu_custom_call.1} parent=1 // pred_check_branch
      %329 = sbr.rel (0) target = $region29
    $region28: #{tpu_custom_call.1} parent=1 // pred_region
      %330 = dma.done [#allocation4], 128
    $region29: #{tpu_custom_call.1} parent=1 // pred_fallthru
      _
    %331 = vsyncpa [#allocation3], 1
    %332 = vsyncpa [#allocation6], 1
    %333 = vsyncpa [#allocation4], 1

</llo_original>
